<compile_context>
chip_gen: v6e
topology: v6e:2x2x1
jax: 0.10.0
libtpu: 0.0.40
codegen_flags: <defaults>
</compile_context>

<pallas_src>
import functools

import jax
import jax.numpy as jnp
from jax import lax
from jax.experimental import pallas as pl
from jax.experimental.pallas import tpu as pltpu


_INV_SQRT2 = 0.7071067811865476


def _layernorm(v, gamma, beta, eps=1e-5):
    # PyTorch nn.LayerNorm: biased variance, eps inside sqrt.
    mu = jnp.mean(v, axis=-1, keepdims=True)
    var = jnp.mean((v - mu) ** 2, axis=-1, keepdims=True)
    return (v - mu) * lax.rsqrt(var + eps) * gamma + beta


def _gelu_exact(x):
    # nn.GELU() default = exact erf GELU (kept for PyTorch parity).
    # TODO(synk): optional tanh-approx GELU (EUP path) when accuracy budget allows.
    return 0.5 * x * (1.0 + lax.erf(x * jnp.asarray(_INV_SQRT2, x.dtype)))


def mixer_block_kernel(x_ref, gamma_ref, beta_ref,
                       wt1_ref, bt1_ref, wt2_ref, bt2_ref,
                       wc1_ref, bc1_ref, wc2_ref, bc2_ref,
                       out_ref, *, matmul_dtype):
    if matmul_dtype is None:
        cast = lambda a: a
    else:
        cast = lambda a: a.astype(matmul_dtype)

    # Load small parameters once per grid step.
    gamma = gamma_ref[0]          # (C,)
    beta = beta_ref[0]            # (C,)
    bt1 = bt1_ref[0]              # (T,)
    bt2 = bt2_ref[...]            # (P, 1)
    bc1 = bc1_ref[0]              # (H,)
    bc2 = bc2_ref[0]              # (C,)

    x = x_ref[0].astype(jnp.float32)                                # (P, C)

    # ---- LayerNorm over the channel dim ----
    y = _layernorm(x, gamma, beta)                                  # (P, C)

    # ---- Token-mixing MLP (no activation transposes) ----
    # h[c, t] = sum_p y[p, c] * wt1[p, t]          ( == y^T @ wt1 )
    h = lax.dot_general(cast(y), cast(wt1_ref[...]),
                        (((0,), (0,)), ((), ())),
                        preferred_element_type=jnp.float32)         # (C, T)
    h = _gelu_exact(h + bt1)
    # y_token[p, c] = sum_t wt2[p, t] * h[c, t]    ( == wt2 @ h^T )
    y_token = lax.dot_general(cast(wt2_ref[...]), cast(h),
                              (((1,), (1,)), ((), ())),
                              preferred_element_type=jnp.float32)   # (P, C)
    y_token = y_token + bt2                                         # bias along P

    # ---- Second LayerNorm (same shared params) + channel-mixing MLP ----
    z = _layernorm(y_token, gamma, beta)                            # (P, C)
    h2 = jnp.dot(cast(z), cast(wc1_ref[...]),
                 preferred_element_type=jnp.float32)                # (P, H)
    h2 = _gelu_exact(h2 + bc1)
    z = jnp.dot(cast(h2), cast(wc2_ref[...]),
                preferred_element_type=jnp.float32)                 # (P, C)
    z = z + bc2

    out_ref[0] = (y_token + z).astype(out_ref.dtype)


def _vmem_limit_bytes(P, C, T, H, itemsize=4):
    """Rough VMEM budget: double-buffered I/O tiles + resident params + f32 temps."""
    io_tiles = 2 * 2 * P * C                                   # x, out (double-buffered)
    params = 2 * (2 * C                                        # gamma, beta
                  + P * T + T + P * T + P                      # wt1, bt1, wt2, bt2
                  + C * H + H + H * C + C)                     # wc1, bc1, wc2, bc2
    interm = (C * T + P * H + 6 * P * C) * 4                   # in-kernel f32 temporaries
    need = (io_tiles + params) * itemsize + interm
    # Cap at 64 MiB so the request is valid on every generation (v7x VMEM = 64 MiB).
    return int(min(64 * 2**20, max(32 * 2**20, 2 * need)))


def mixer_block(x, params, *, matmul_dtype=None, vmem_limit_bytes=None):
    """x: (B, P, C). params: dict (see init_params for layouts)."""
    B, P, C = x.shape
    T = params["wt1"].shape[1]
    H = params["wc1"].shape[1]
    if vmem_limit_bytes is None:
        vmem_limit_bytes = _vmem_limit_bytes(P, C, T, H, x.dtype.itemsize)

    # Constant index maps -> these blocks stay resident across the batch grid.
    const = lambda shape: pl.BlockSpec(shape, lambda b: (0, 0))
    kernel = functools.partial(mixer_block_kernel, matmul_dtype=matmul_dtype)

    return pl.pallas_call(
        kernel,
        out_shape=jax.ShapeDtypeStruct((B, P, C), x.dtype),
        grid_spec=pltpu.PrefetchScalarGridSpec(
            num_scalar_prefetch=0,
            grid=(B,),
            in_specs=[
                pl.BlockSpec((1, P, C), lambda b: (b, 0, 0)),   # x (per-batch tile)
                const((1, C)),      # gamma
                const((1, C)),      # beta
                const((P, T)),      # wt1: Linear(P->T) weight, (in, out) layout
                const((1, T)),      # bt1
                const((P, T)),      # wt2: Linear(T->P) weight, PyTorch (out, in) layout
                const((P, 1)),      # bt2 (bias along P)
                const((C, H)),      # wc1: Linear(C->H) weight, (in, out) layout
                const((1, H)),      # bc1
                const((H, C)),      # wc2: Linear(H->C) weight, (in, out) layout
                const((1, C)),      # bc2
            ],
            out_specs=pl.BlockSpec((1, P, C), lambda b: (b, 0, 0)),
        ),
        compiler_params=pltpu.CompilerParams(
            dimension_semantics=("parallel",),
            vmem_limit_bytes=vmem_limit_bytes),
    )(x, params["gamma"], params["beta"],
      params["wt1"], params["bt1"], params["wt2"], params["bt2"],
      params["wc1"], params["bc1"], params["wc2"], params["bc2"])


def mixer_block_ref(x, params):
    """Pure-JAX reference mirroring the PyTorch forward, for validation."""
    gamma, beta = params["gamma"][0], params["beta"][0]
    y = _layernorm(x, gamma, beta)
    yt = jnp.swapaxes(y, 1, 2)                                            # b c p
    h = _gelu_exact(jnp.einsum("bcp,pt->bct", yt, params["wt1"]) + params["bt1"][0])
    yt = jnp.einsum("bct,pt->bcp", h, params["wt2"]) + params["bt2"][:, 0]
    y_token = jnp.swapaxes(yt, 1, 2)                                      # b p c
    z = _layernorm(y_token, gamma, beta)
    h2 = _gelu_exact(jnp.einsum("bpc,ch->bph", z, params["wc1"]) + params["bc1"][0])
    z = jnp.einsum("bph,hc->bpc", h2, params["wc2"]) + params["bc2"][0]
    return y_token + z


def init_params(key, dim, num_patches, tokens_mlp_dim, channels_mlp_dim):
    ks = jax.random.split(key, 8)
    s = 0.05
    return {
        # Shared LayerNorm (the PyTorch module reuses one nn.LayerNorm twice).
        "gamma": jnp.ones((1, dim), jnp.float32),
        "beta": jnp.zeros((1, dim), jnp.float32),
        # Token-mixing MLP.
        "wt1": s * jax.random.normal(ks[0], (num_patches, tokens_mlp_dim), jnp.float32),  # (in=P, out=T)
        "bt1": s * jax.random.normal(ks[1], (1, tokens_mlp_dim), jnp.float32),
        "wt2": s * jax.random.normal(ks[2], (num_patches, tokens_mlp_dim), jnp.float32),  # (out=P, in=T)
        "bt2": s * jax.random.normal(ks[3], (num_patches, 1), jnp.float32),
        # Channel-mixing MLP.
        "wc1": s * jax.random.normal(ks[4], (dim, channels_mlp_dim), jnp.float32),        # (in=C, out=H)
        "bc1": s * jax.random.normal(ks[5], (1, channels_mlp_dim), jnp.float32),
        "wc2": s * jax.random.normal(ks[6], (channels_mlp_dim, dim), jnp.float32),        # (in=H, out=C)
        "bc2": s * jax.random.normal(ks[7], (1, dim), jnp.float32),
    }


if __name__ == "__main__":
    # Small but lane/sublane-aligned demo config (even B for v7x megacore).
    B = 4       # batch
    P = 8       # num_patches   (sublane multiple)
    C = 128     # dim           (lane multiple -> unmasked stores)
    T = 128     # tokens_mlp_dim
    H = 256     # channels_mlp_dim

    key = jax.random.PRNGKey(0)
    kx, kp = jax.random.split(key)
    x = jax.random.normal(kx, (B, P, C), jnp.float32)
    params = init_params(kp, C, P, T, H)

    ref = mixer_block_ref(x, params)
    scale = float(jnp.max(jnp.abs(ref))) + 1e-6

    # f32 path (PyTorch-parity numerics).
    out = jax.block_until_ready(mixer_block(x, params))
    assert out.shape == (B, P, C)
    err = float(jnp.max(jnp.abs(out - ref)))
    # Relative tolerance: both kernel and reference use the TPU's default matmul
    # precision; a real bug produces O(0.1-1) errors, rounding stays far below 2%.
    assert err / scale < 2e-2, f"f32 mismatch vs reference: abs={err}, rel={err / scale}"

    # bf16-operand fast path (v6e/v7x MXU), f32 accumulation + f32 LayerNorm/GELU.
    out_bf16 = jax.block_until_ready(mixer_block(x, params, matmul_dtype=jnp.bfloat16))
    err_bf16 = float(jnp.max(jnp.abs(out_bf16 - ref)))
    assert err_bf16 / scale < 1e-1, f"bf16 mismatch vs reference: rel={err_bf16 / scale}"

    print("KERNEL_OK")
</pallas_src>

<mosaic_0001>
module attributes {stable_mosaic.version = 11 : i64} {
  func.func @mixer_block_kernel(%arg0: i32, %arg1: memref<1x8x128xf32, #tpu.memory_space<vmem>>, %arg2: memref<1x128xf32, #tpu.memory_space<vmem>>, %arg3: memref<1x128xf32, #tpu.memory_space<vmem>>, %arg4: memref<8x128xf32, #tpu.memory_space<vmem>>, %arg5: memref<1x128xf32, #tpu.memory_space<vmem>>, %arg6: memref<8x128xf32, #tpu.memory_space<vmem>>, %arg7: memref<8x1xf32, #tpu.memory_space<vmem>>, %arg8: memref<128x256xf32, #tpu.memory_space<vmem>>, %arg9: memref<1x256xf32, #tpu.memory_space<vmem>>, %arg10: memref<256x128xf32, #tpu.memory_space<vmem>>, %arg11: memref<1x128xf32, #tpu.memory_space<vmem>>, %arg12: memref<1x8x128xf32, #tpu.memory_space<vmem>>) attributes {dimension_semantics = [#tpu.dimension_semantics<parallel>], iteration_bounds = array<i64: 4>, scalar_prefetch = 0 : i64, scratch_operands = 0 : i64, tpu.core_type = #tpu.core_type<tc>, window_params = [{transform_indices = @transform_0, window_bounds = array<i64: 1, 8, 128>}, {pipeline_mode = #tpu.pipeline_mode<synchronous>, transform_indices = @transform_1, window_bounds = array<i64: 1, 128>}, {pipeline_mode = #tpu.pipeline_mode<synchronous>, transform_indices = @transform_2, window_bounds = array<i64: 1, 128>}, {pipeline_mode = #tpu.pipeline_mode<synchronous>, transform_indices = @transform_3, window_bounds = array<i64: 8, 128>}, {pipeline_mode = #tpu.pipeline_mode<synchronous>, transform_indices = @transform_4, window_bounds = array<i64: 1, 128>}, {pipeline_mode = #tpu.pipeline_mode<synchronous>, transform_indices = @transform_5, window_bounds = array<i64: 8, 128>}, {pipeline_mode = #tpu.pipeline_mode<synchronous>, transform_indices = @transform_6, window_bounds = array<i64: 8, 1>}, {pipeline_mode = #tpu.pipeline_mode<synchronous>, transform_indices = @transform_7, window_bounds = array<i64: 128, 256>}, {pipeline_mode = #tpu.pipeline_mode<synchronous>, transform_indices = @transform_8, window_bounds = array<i64: 1, 256>}, {pipeline_mode = #tpu.pipeline_mode<synchronous>, transform_indices = @transform_9, window_bounds = array<i64: 256, 128>}, {pipeline_mode = #tpu.pipeline_mode<synchronous>, transform_indices = @transform_10, window_bounds = array<i64: 1, 128>}, {transform_indices = @transform_11, window_bounds = array<i64: 1, 8, 128>}]} {
    %c0 = arith.constant 0 : index
    %c0_0 = arith.constant 0 : index
    %0 = vector.load %arg2[%c0, %c0_0] : memref<1x128xf32, #tpu.memory_space<vmem>>, vector<1x128xf32>
    %1 = vector.shape_cast %0 : vector<1x128xf32> to vector<128xf32>
    %c0_1 = arith.constant 0 : index
    %c0_2 = arith.constant 0 : index
    %2 = vector.load %arg3[%c0_1, %c0_2] : memref<1x128xf32, #tpu.memory_space<vmem>>, vector<1x128xf32>
    %3 = vector.shape_cast %2 : vector<1x128xf32> to vector<128xf32>
    %c0_3 = arith.constant 0 : index
    %c0_4 = arith.constant 0 : index
    %4 = vector.load %arg5[%c0_3, %c0_4] : memref<1x128xf32, #tpu.memory_space<vmem>>, vector<1x128xf32>
    %5 = vector.shape_cast %4 : vector<1x128xf32> to vector<128xf32>
    %c0_5 = arith.constant 0 : index
    %c0_6 = arith.constant 0 : index
    %6 = vector.load %arg7[%c0_5, %c0_6] : memref<8x1xf32, #tpu.memory_space<vmem>>, vector<8x1xf32>
    %c0_7 = arith.constant 0 : index
    %c0_8 = arith.constant 0 : index
    %7 = vector.load %arg9[%c0_7, %c0_8] : memref<1x256xf32, #tpu.memory_space<vmem>>, vector<1x256xf32>
    %8 = vector.shape_cast %7 : vector<1x256xf32> to vector<256xf32>
    %c0_9 = arith.constant 0 : index
    %c0_10 = arith.constant 0 : index
    %9 = vector.load %arg11[%c0_9, %c0_10] : memref<1x128xf32, #tpu.memory_space<vmem>>, vector<1x128xf32>
    %10 = vector.shape_cast %9 : vector<1x128xf32> to vector<128xf32>
    %c0_11 = arith.constant 0 : index
    %c0_12 = arith.constant 0 : index
    %c0_13 = arith.constant 0 : index
    %11 = vector.load %arg1[%c0_11, %c0_12, %c0_13] : memref<1x8x128xf32, #tpu.memory_space<vmem>>, vector<1x8x128xf32>
    %12 = vector.shape_cast %11 : vector<1x8x128xf32> to vector<8x128xf32>
    %cst = arith.constant dense<0.000000e+00> : vector<8xf32>
    %13 = vector.multi_reduction <add>, %12, %cst [1] : vector<8x128xf32> to vector<8xf32>
    %14 = vector.shape_cast %13 : vector<8xf32> to vector<8x1xf32>
    %cst_14 = arith.constant 1.280000e+02 : f32
    %15 = vector.broadcast %cst_14 : f32 to vector<8x1xf32>
    %16 = arith.divf %14, %15 : vector<8x1xf32>
    %17 = vector.broadcast %16 : vector<8x1xf32> to vector<8x128xf32>
    %18 = arith.subf %12, %17 : vector<8x128xf32>
    %19 = arith.mulf %18, %18 : vector<8x128xf32>
    %cst_15 = arith.constant dense<0.000000e+00> : vector<8xf32>
    %20 = vector.multi_reduction <add>, %19, %cst_15 [1] : vector<8x128xf32> to vector<8xf32>
    %21 = vector.shape_cast %20 : vector<8xf32> to vector<8x1xf32>
    %cst_16 = arith.constant 1.280000e+02 : f32
    %22 = vector.broadcast %cst_16 : f32 to vector<8x1xf32>
    %23 = arith.divf %21, %22 : vector<8x1xf32>
    %24 = vector.broadcast %16 : vector<8x1xf32> to vector<8x128xf32>
    %25 = arith.subf %12, %24 : vector<8x128xf32>
    %cst_17 = arith.constant 9.99999974E-6 : f32
    %26 = vector.broadcast %cst_17 : f32 to vector<8x1xf32>
    %27 = arith.addf %23, %26 : vector<8x1xf32>
    %28 = math.rsqrt %27 : vector<8x1xf32>
    %29 = vector.broadcast %28 : vector<8x1xf32> to vector<8x128xf32>
    %30 = arith.mulf %25, %29 : vector<8x128xf32>
    %31 = vector.shape_cast %1 : vector<128xf32> to vector<1x128xf32>
    %32 = vector.broadcast %31 : vector<1x128xf32> to vector<8x128xf32>
    %33 = arith.mulf %30, %32 : vector<8x128xf32>
    %34 = vector.shape_cast %3 : vector<128xf32> to vector<1x128xf32>
    %35 = vector.broadcast %34 : vector<1x128xf32> to vector<8x128xf32>
    %36 = arith.addf %33, %35 : vector<8x128xf32>
    %c0_18 = arith.constant 0 : index
    %c0_19 = arith.constant 0 : index
    %37 = vector.load %arg4[%c0_18, %c0_19] : memref<8x128xf32, #tpu.memory_space<vmem>>, vector<8x128xf32>
    %cst_20 = arith.constant dense<0.000000e+00> : vector<128x128xf32>
    %38 = tpu.matmul %36, %37, %cst_20 {dimension_numbers = #tpu.dot_dimension_numbers<[0], [0], [1], [1], [0, 1, 1, 1], [], []>} : vector<8x128xf32>, vector<8x128xf32>, vector<128x128xf32> -> vector<128x128xf32>
    %39 = vector.shape_cast %5 : vector<128xf32> to vector<1x128xf32>
    %40 = vector.broadcast %39 : vector<1x128xf32> to vector<128x128xf32>
    %41 = arith.addf %38, %40 : vector<128x128xf32>
    %cst_21 = arith.constant 5.000000e-01 : f32
    %42 = vector.broadcast %cst_21 : f32 to vector<128x128xf32>
    %43 = arith.mulf %42, %41 : vector<128x128xf32>
    %cst_22 = arith.constant 0.707106769 : f32
    %44 = vector.broadcast %cst_22 : f32 to vector<128x128xf32>
    %45 = arith.mulf %41, %44 : vector<128x128xf32>
    %46 = math.erf %45 : vector<128x128xf32>
    %cst_23 = arith.constant 1.000000e+00 : f32
    %47 = vector.broadcast %cst_23 : f32 to vector<128x128xf32>
    %48 = arith.addf %47, %46 : vector<128x128xf32>
    %49 = arith.mulf %43, %48 : vector<128x128xf32>
    %c0_24 = arith.constant 0 : index
    %c0_25 = arith.constant 0 : index
    %50 = vector.load %arg6[%c0_24, %c0_25] : memref<8x128xf32, #tpu.memory_space<vmem>>, vector<8x128xf32>
    %cst_26 = arith.constant dense<0.000000e+00> : vector<8x128xf32>
    %51 = tpu.matmul %50, %49, %cst_26 {dimension_numbers = #tpu.dot_dimension_numbers<[1], [1], [0], [0], [0, 0, 1, 0], [], []>} : vector<8x128xf32>, vector<128x128xf32>, vector<8x128xf32> -> vector<8x128xf32>
    %52 = vector.broadcast %6 : vector<8x1xf32> to vector<8x128xf32>
    %53 = arith.addf %51, %52 : vector<8x128xf32>
    %cst_27 = arith.constant dense<0.000000e+00> : vector<8xf32>
    %54 = vector.multi_reduction <add>, %53, %cst_27 [1] : vector<8x128xf32> to vector<8xf32>
    %55 = vector.shape_cast %54 : vector<8xf32> to vector<8x1xf32>
    %cst_28 = arith.constant 1.280000e+02 : f32
    %56 = vector.broadcast %cst_28 : f32 to vector<8x1xf32>
    %57 = arith.divf %55, %56 : vector<8x1xf32>
    %58 = vector.broadcast %57 : vector<8x1xf32> to vector<8x128xf32>
    %59 = arith.subf %53, %58 : vector<8x128xf32>
    %60 = arith.mulf %59, %59 : vector<8x128xf32>
    %cst_29 = arith.constant dense<0.000000e+00> : vector<8xf32>
    %61 = vector.multi_reduction <add>, %60, %cst_29 [1] : vector<8x128xf32> to vector<8xf32>
    %62 = vector.shape_cast %61 : vector<8xf32> to vector<8x1xf32>
    %cst_30 = arith.constant 1.280000e+02 : f32
    %63 = vector.broadcast %cst_30 : f32 to vector<8x1xf32>
    %64 = arith.divf %62, %63 : vector<8x1xf32>
    %65 = vector.broadcast %57 : vector<8x1xf32> to vector<8x128xf32>
    %66 = arith.subf %53, %65 : vector<8x128xf32>
    %cst_31 = arith.constant 9.99999974E-6 : f32
    %67 = vector.broadcast %cst_31 : f32 to vector<8x1xf32>
    %68 = arith.addf %64, %67 : vector<8x1xf32>
    %69 = math.rsqrt %68 : vector<8x1xf32>
    %70 = vector.broadcast %69 : vector<8x1xf32> to vector<8x128xf32>
    %71 = arith.mulf %66, %70 : vector<8x128xf32>
    %72 = vector.shape_cast %1 : vector<128xf32> to vector<1x128xf32>
    %73 = vector.broadcast %72 : vector<1x128xf32> to vector<8x128xf32>
    %74 = arith.mulf %71, %73 : vector<8x128xf32>
    %75 = vector.shape_cast %3 : vector<128xf32> to vector<1x128xf32>
    %76 = vector.broadcast %75 : vector<1x128xf32> to vector<8x128xf32>
    %77 = arith.addf %74, %76 : vector<8x128xf32>
    %c0_32 = arith.constant 0 : index
    %c0_33 = arith.constant 0 : index
    %78 = vector.load %arg8[%c0_32, %c0_33] : memref<128x256xf32, #tpu.memory_space<vmem>>, vector<128x256xf32>
    %cst_34 = arith.constant dense<0.000000e+00> : vector<8x256xf32>
    %79 = tpu.matmul %77, %78, %cst_34 {dimension_numbers = #tpu.dot_dimension_numbers<[1], [0], [0], [1], [0, 0, 1, 1], [], []>} : vector<8x128xf32>, vector<128x256xf32>, vector<8x256xf32> -> vector<8x256xf32>
    %80 = vector.shape_cast %8 : vector<256xf32> to vector<1x256xf32>
    %81 = vector.broadcast %80 : vector<1x256xf32> to vector<8x256xf32>
    %82 = arith.addf %79, %81 : vector<8x256xf32>
    %cst_35 = arith.constant 5.000000e-01 : f32
    %83 = vector.broadcast %cst_35 : f32 to vector<8x256xf32>
    %84 = arith.mulf %83, %82 : vector<8x256xf32>
    %cst_36 = arith.constant 0.707106769 : f32
    %85 = vector.broadcast %cst_36 : f32 to vector<8x256xf32>
    %86 = arith.mulf %82, %85 : vector<8x256xf32>
    %87 = math.erf %86 : vector<8x256xf32>
    %cst_37 = arith.constant 1.000000e+00 : f32
    %88 = vector.broadcast %cst_37 : f32 to vector<8x256xf32>
    %89 = arith.addf %88, %87 : vector<8x256xf32>
    %90 = arith.mulf %84, %89 : vector<8x256xf32>
    %c0_38 = arith.constant 0 : index
    %c0_39 = arith.constant 0 : index
    %91 = vector.load %arg10[%c0_38, %c0_39] : memref<256x128xf32, #tpu.memory_space<vmem>>, vector<256x128xf32>
    %cst_40 = arith.constant dense<0.000000e+00> : vector<8x128xf32>
    %92 = tpu.matmul %90, %91, %cst_40 {dimension_numbers = #tpu.dot_dimension_numbers<[1], [0], [0], [1], [0, 0, 1, 1], [], []>} : vector<8x256xf32>, vector<256x128xf32>, vector<8x128xf32> -> vector<8x128xf32>
    %93 = vector.shape_cast %10 : vector<128xf32> to vector<1x128xf32>
    %94 = vector.broadcast %93 : vector<1x128xf32> to vector<8x128xf32>
    %95 = arith.addf %92, %94 : vector<8x128xf32>
    %96 = arith.addf %53, %95 : vector<8x128xf32>
    %c0_41 = arith.constant 0 : index
    %c0_42 = arith.constant 0 : index
    %c0_43 = arith.constant 0 : index
    %97 = vector.load %arg12[%c0_41, %c0_42, %c0_43] : memref<1x8x128xf32, #tpu.memory_space<vmem>>, vector<1x8x128xf32>
    %98 = vector.shape_cast %97 : vector<1x8x128xf32> to vector<8x128xf32>
    %99 = vector.shape_cast %96 : vector<8x128xf32> to vector<1x8x128xf32>
    tpu.vector_store %arg12[%c0_41, %c0_42, %c0_43], %99 {strides = array<i32>} : memref<1x8x128xf32, #tpu.memory_space<vmem>>, vector<1x8x128xf32>,
    return
  }
  func.func @transform_0(%arg0: i32) -> (i32, i32, i32) {
    %c0_i32 = arith.constant 0 : i32
    %c0_i32_0 = arith.constant 0 : i32
    %c0_i32_1 = arith.constant 0 : i32
    return %arg0, %c0_i32, %c0_i32_0 : i32, i32, i32
  }
  func.func @transform_1(%arg0: i32) -> (i32, i32) {
    %c0_i32 = arith.constant 0 : i32
    %c0_i32_0 = arith.constant 0 : i32
    %c0_i32_1 = arith.constant 0 : i32
    return %c0_i32, %c0_i32_0 : i32, i32
  }
  func.func @transform_2(%arg0: i32) -> (i32, i32) {
    %c0_i32 = arith.constant 0 : i32
    %c0_i32_0 = arith.constant 0 : i32
    %c0_i32_1 = arith.constant 0 : i32
    return %c0_i32, %c0_i32_0 : i32, i32
  }
  func.func @transform_3(%arg0: i32) -> (i32, i32) {
    %c0_i32 = arith.constant 0 : i32
    %c0_i32_0 = arith.constant 0 : i32
    %c0_i32_1 = arith.constant 0 : i32
    return %c0_i32, %c0_i32_0 : i32, i32
  }
  func.func @transform_4(%arg0: i32) -> (i32, i32) {
    %c0_i32 = arith.constant 0 : i32
    %c0_i32_0 = arith.constant 0 : i32
    %c0_i32_1 = arith.constant 0 : i32
    return %c0_i32, %c0_i32_0 : i32, i32
  }
  func.func @transform_5(%arg0: i32) -> (i32, i32) {
    %c0_i32 = arith.constant 0 : i32
    %c0_i32_0 = arith.constant 0 : i32
    %c0_i32_1 = arith.constant 0 : i32
    return %c0_i32, %c0_i32_0 : i32, i32
  }
  func.func @transform_6(%arg0: i32) -> (i32, i32) {
    %c0_i32 = arith.constant 0 : i32
    %c0_i32_0 = arith.constant 0 : i32
    %c0_i32_1 = arith.constant 0 : i32
    return %c0_i32, %c0_i32_0 : i32, i32
  }
  func.func @transform_7(%arg0: i32) -> (i32, i32) {
    %c0_i32 = arith.constant 0 : i32
    %c0_i32_0 = arith.constant 0 : i32
    %c0_i32_1 = arith.constant 0 : i32
    return %c0_i32, %c0_i32_0 : i32, i32
  }
  func.func @transform_8(%arg0: i32) -> (i32, i32) {
    %c0_i32 = arith.constant 0 : i32
    %c0_i32_0 = arith.constant 0 : i32
    %c0_i32_1 = arith.constant 0 : i32
    return %c0_i32, %c0_i32_0 : i32, i32
  }
  func.func @transform_9(%arg0: i32) -> (i32, i32) {
    %c0_i32 = arith.constant 0 : i32
    %c0_i32_0 = arith.constant 0 : i32
    %c0_i32_1 = arith.constant 0 : i32
    return %c0_i32, %c0_i32_0 : i32, i32
  }
  func.func @transform_10(%arg0: i32) -> (i32, i32) {
    %c0_i32 = arith.constant 0 : i32
    %c0_i32_0 = arith.constant 0 : i32
    %c0_i32_1 = arith.constant 0 : i32
    return %c0_i32, %c0_i32_0 : i32, i32
  }
  func.func @transform_11(%arg0: i32) -> (i32, i32, i32) {
    %c0_i32 = arith.constant 0 : i32
    %c0_i32_0 = arith.constant 0 : i32
    %c0_i32_1 = arith.constant 0 : i32
    return %arg0, %c0_i32, %c0_i32_0 : i32, i32, i32
  }
}

</mosaic_0001>

<llo_original>
// kernel: tpu_custom_call.1
$region0: #{tpu_custom_call.1}
  #allocation0 [shape = 'u32[]', space=smem, size = 0x4, offset = 0x4, fixed_abs, tag = 'smem constant byte address 0x4 - core index']
  #allocation1 [shape = 'u32[144,128]{1,0:T(1,128)}', space=vmem, size = 0x12000, scoped, tag = 'internal scratch']
  %s0 = inlined_call_operand.hbm [shape: f32[4,8,128], index: 0, kind: input, shape index: {}]
  %s1 = inlined_call_operand.hbm [shape: f32[1,128], index: 1, kind: input, shape index: {}]
  %s2 = inlined_call_operand.hbm [shape: f32[1,128], index: 2, kind: input, shape index: {}]
  %s3 = inlined_call_operand.vmem [shape: f32[8,128], index: 3, kind: input, shape index: {}]
  %s4 = inlined_call_operand.hbm [shape: f32[1,128], index: 4, kind: input, shape index: {}]
  %s5 = inlined_call_operand.vmem [shape: f32[8,128], index: 5, kind: input, shape index: {}]
  %s6 = inlined_call_operand.vmem [shape: f32[8,1], index: 6, kind: input, shape index: {}]
  %s7 = inlined_call_operand.hbm [shape: f32[128,256], index: 7, kind: input, shape index: {}]
  %s8 = inlined_call_operand.vmem [shape: f32[1,256], index: 8, kind: input, shape index: {}]
  %s9 = inlined_call_operand.hbm [shape: f32[256,128], index: 9, kind: input, shape index: {}]
  %s10 = inlined_call_operand.vmem [shape: f32[1,128], index: 10, kind: input, shape index: {}]
  %s11 = inlined_call_operand.hbm [shape: f32[4,8,128], index: 11, kind: output, shape index: {}]
  %s12 = sld [smem:[#allocation0]]
  $region101: #{tpu_custom_call.1} parent=0
    _
  %s14 = ssub.s32 1, %s12
  %s15 = scalar_select 0, %s14, %s12
  $region1: #{tpu_custom_call.1} parent=0
    #allocation2 [shape = 'u8[8192]{0}', space=vmem, size = 0x2000, scoped, tag = 'input window, operand 0']
    #allocation3 [shape = 's32[2]{0}', space=sflag, size = 0x8, scoped, tag = 'scoped memory for tpu_custom_call.1']
    #allocation4 [shape = 's32[2]{0}', space=sflag, size = 0x8, scoped, tag = 'scoped memory for tpu_custom_call.1']
    #allocation5 [shape = 'u8[512]{0}', space=vmem, size = 0x400, scoped, tag = 'input window, operand 1, single buffered']
    #allocation6 [shape = 's32[1]{0}', space=sflag, size = 0x4, scoped, tag = 'scoped memory for tpu_custom_call.1']
    #allocation7 [shape = 'u8[512]{0}', space=vmem, size = 0x400, scoped, tag = 'input window, operand 2, single buffered']
    #allocation8 [shape = 'u8[512]{0}', space=vmem, size = 0x400, scoped, tag = 'input window, operand 4, single buffered']
    #allocation9 [shape = 's32[1]{0}', space=sflag, size = 0x4, scoped, tag = 'scoped memory for tpu_custom_call.1']
    #allocation10 [shape = 'u8[131072]{0}', space=vmem, size = 0x20000, scoped, tag = 'input window, operand 7, single buffered']
    #allocation11 [shape = 'u8[131072]{0}', space=vmem, size = 0x20000, scoped, tag = 'input window, operand 9, single buffered']
    #allocation12 [shape = 's32[1]{0}', space=sflag, size = 0x4, scoped, tag = 'scoped memory for tpu_custom_call.1']
    #allocation13 [shape = 'u8[8192]{0}', space=vmem, size = 0x2000, scoped, tag = 'output window, operand 0']
    %16 = vsyncpa [#allocation3], 0
    %s17 = scalar_lea.sflag [#allocation3], 1
    %18 = vsyncpa %s17, 0
    %19 = vsyncpa [#allocation6], 0
    %20 = vsyncpa [#allocation9], 0
    %21 = vsyncpa [#allocation12], 0
    %22 = vsyncpa [#allocation4], 0
    %s23 = scalar_lea.sflag [#allocation4], 1
    %24 = vsyncpa %s23, 0
    loop: start=0, step=1, limit=6
    $region2: #{tpu_custom_call.1} parent=1 // loop_pre_header
      _
    $region3: #{tpu_custom_call.1} parent=1 // loop_header
      %s26 = sphi 0, %s30
      %p27 = scmp.ge.s32.totalorder %s26, 6
      %s36 = sphi 0, %s38
      %s39 = sphi 0, %s36
      %s40 = sphi 0, %s39
      %s56 = sphi 0, %s40
      %s60 = sphi 0, %s60
      %s62 = sphi 0, %s60
      %s63 = sphi 0, %s62
      %s77 = sphi 0, %s63
      %s81 = sphi 0, %s81
      %s83 = sphi 0, %s81
      %s84 = sphi 0, %s83
      %s98 = sphi 0, %s84
      %s102 = sphi 0, %s102
      %s104 = sphi 0, %s102
      %s105 = sphi 0, %s104
      %s119 = sphi 0, %s105
      %s123 = sphi 0, %s123
      %s125 = sphi 0, %s123
      %s126 = sphi 0, %s125
      %s140 = sphi 0, %s126
      %s144 = sphi 0, %s144
      %s146 = sphi 0, %s144
      %s147 = sphi 0, %s146
      %s161 = sphi 0, %s147
      %s165 = sphi 0, %s165
      %s167 = sphi 0, %s165
      %s168 = sphi 0, %s167
      %s182 = sphi 0, %s168
      %s186 = sphi 0, %s186
      %s188 = sphi 0, %s186
      %s189 = sphi 0, %s188
      %s203 = sphi 0, %s189
      %s207 = sphi 0, %s207
      %s209 = sphi 0, %s207
      %s210 = sphi 0, %s209
      %s224 = sphi 0, %s210
      %s228 = sphi 0, %s228
      %s230 = sphi 0, %s228
      %s231 = sphi 0, %s230
      %s245 = sphi 0, %s231
      %s249 = sphi 0, %s249
      %s251 = sphi 0, %s249
      %s252 = sphi 0, %s251
      %s266 = sphi 0, %s252
      %s272 = sphi 0, %s274
      %s275 = sphi 0, %s272
      %s276 = sphi 0, %s275
      %s292 = sphi 0, %s276
    $region4: #{tpu_custom_call.1} parent=1 // loop_header_branch
      %29 = sbr.rel (%p27) target = $region8
    $region5: #{tpu_custom_call.1} parent=1 // loop_body
      %s31 = ssub.s32 %s26, 1
      %s32 = ssub.s32 %s26, 2
      %s33 = sadd.s32 %s26, 1
      %s34 = ssub.s32 %s26, %s33
      %p35 = scmp.eq.s32.totalorder %s34, 0
      %s37 = sadd.s32 %s36, 1
      %s38 = scalar_select %p35, %s36, %s37
      %p41 = pneg %p35
      %p42 = scmp.eq.s32.totalorder %s26, 3
      %p43 = por %p41, %p42
      %p44 = scmp.ne.s32.totalorder %s36, %s39
      %p45 = scmp.eq.s32.totalorder %s26, 0
      %p46 = por %p44, %p45
      %p47 = scmp.ne.s32.totalorder %s36, %s39
      %p48 = scmp.eq.s32.totalorder %s31, 3
      %p49 = por %p47, %p48
      %p50 = scmp.ne.s32.totalorder %s39, %s40
      %p51 = scmp.eq.s32.totalorder %s31, 0
      %p52 = por %p50, %p51
      %p53 = scmp.ne.s32.totalorder %s39, %s40
      %p54 = scmp.eq.s32.totalorder %s32, 3
      %p55 = por %p53, %p54
      %p57 = scmp.ne.s32.totalorder %s40, %s56
      %p58 = scmp.eq.s32.totalorder %s32, 0
      %p59 = por %p57, %p58
      %s61 = sadd.s32 %s60, 1
      %p64 = scmp.eq.s32.totalorder %s26, 3
      %p65 = scmp.ne.s32.totalorder %s60, %s62
      %p66 = scmp.eq.s32.totalorder %s26, 0
      %p67 = por %p65, %p66
      %p68 = scmp.ne.s32.totalorder %s60, %s62
      %p69 = scmp.eq.s32.totalorder %s31, 3
      %p70 = por %p68, %p69
      %p71 = scmp.ne.s32.totalorder %s62, %s63
      %p72 = scmp.eq.s32.totalorder %s31, 0
      %p73 = por %p71, %p72
      %p74 = scmp.ne.s32.totalorder %s62, %s63
      %p75 = scmp.eq.s32.totalorder %s32, 3
      %p76 = por %p74, %p75
      %p78 = scmp.ne.s32.totalorder %s63, %s77
      %p79 = scmp.eq.s32.totalorder %s32, 0
      %p80 = por %p78, %p79
      %s82 = sadd.s32 %s81, 1
      %p85 = scmp.eq.s32.totalorder %s26, 3
      %p86 = scmp.ne.s32.totalorder %s81, %s83
      %p87 = scmp.eq.s32.totalorder %s26, 0
      %p88 = por %p86, %p87
      %p89 = scmp.ne.s32.totalorder %s81, %s83
      %p90 = scmp.eq.s32.totalorder %s31, 3
      %p91 = por %p89, %p90
      %p92 = scmp.ne.s32.totalorder %s83, %s84
      %p93 = scmp.eq.s32.totalorder %s31, 0
      %p94 = por %p92, %p93
      %p95 = scmp.ne.s32.totalorder %s83, %s84
      %p96 = scmp.eq.s32.totalorder %s32, 3
      %p97 = por %p95, %p96
      %p99 = scmp.ne.s32.totalorder %s84, %s98
      %p100 = scmp.eq.s32.totalorder %s32, 0
      %p101 = por %p99, %p100
      %s103 = sadd.s32 %s102, 1
      %p106 = scmp.eq.s32.totalorder %s26, 3
      %p107 = scmp.ne.s32.totalorder %s102, %s104
      %p108 = scmp.eq.s32.totalorder %s26, 0
      %p109 = por %p107, %p108
      %p110 = scmp.ne.s32.totalorder %s102, %s104
      %p111 = scmp.eq.s32.totalorder %s31, 3
      %p112 = por %p110, %p111
      %p113 = scmp.ne.s32.totalorder %s104, %s105
      %p114 = scmp.eq.s32.totalorder %s31, 0
      %p115 = por %p113, %p114
      %p116 = scmp.ne.s32.totalorder %s104, %s105
      %p117 = scmp.eq.s32.totalorder %s32, 3
      %p118 = por %p116, %p117
      %p120 = scmp.ne.s32.totalorder %s105, %s119
      %p121 = scmp.eq.s32.totalorder %s32, 0
      %p122 = por %p120, %p121
      %s124 = sadd.s32 %s123, 1
      %p127 = scmp.eq.s32.totalorder %s26, 3
      %p128 = scmp.ne.s32.totalorder %s123, %s125
      %p129 = scmp.eq.s32.totalorder %s26, 0
      %p130 = por %p128, %p129
      %p131 = scmp.ne.s32.totalorder %s123, %s125
      %p132 = scmp.eq.s32.totalorder %s31, 3
      %p133 = por %p131, %p132
      %p134 = scmp.ne.s32.totalorder %s125, %s126
      %p135 = scmp.eq.s32.totalorder %s31, 0
      %p136 = por %p134, %p135
      %p137 = scmp.ne.s32.totalorder %s125, %s126
      %p138 = scmp.eq.s32.totalorder %s32, 3
      %p139 = por %p137, %p138
      %p141 = scmp.ne.s32.totalorder %s126, %s140
      %p142 = scmp.eq.s32.totalorder %s32, 0
      %p143 = por %p141, %p142
      %s145 = sadd.s32 %s144, 1
      %p148 = scmp.eq.s32.totalorder %s26, 3
      %p149 = scmp.ne.s32.totalorder %s144, %s146
      %p150 = scmp.eq.s32.totalorder %s26, 0
      %p151 = por %p149, %p150
      %p152 = scmp.ne.s32.totalorder %s144, %s146
      %p153 = scmp.eq.s32.totalorder %s31, 3
      %p154 = por %p152, %p153
      %p155 = scmp.ne.s32.totalorder %s146, %s147
      %p156 = scmp.eq.s32.totalorder %s31, 0
      %p157 = por %p155, %p156
      %p158 = scmp.ne.s32.totalorder %s146, %s147
      %p159 = scmp.eq.s32.totalorder %s32, 3
      %p160 = por %p158, %p159
      %p162 = scmp.ne.s32.totalorder %s147, %s161
      %p163 = scmp.eq.s32.totalorder %s32, 0
      %p164 = por %p162, %p163
      %s166 = sadd.s32 %s165, 1
      %p169 = scmp.eq.s32.totalorder %s26, 3
      %p170 = scmp.ne.s32.totalorder %s165, %s167
      %p171 = scmp.eq.s32.totalorder %s26, 0
      %p172 = por %p170, %p171
      %p173 = scmp.ne.s32.totalorder %s165, %s167
      %p174 = scmp.eq.s32.totalorder %s31, 3
      %p175 = por %p173, %p174
      %p176 = scmp.ne.s32.totalorder %s167, %s168
      %p177 = scmp.eq.s32.totalorder %s31, 0
      %p178 = por %p176, %p177
      %p179 = scmp.ne.s32.totalorder %s167, %s168
      %p180 = scmp.eq.s32.totalorder %s32, 3
      %p181 = por %p179, %p180
      %p183 = scmp.ne.s32.totalorder %s168, %s182
      %p184 = scmp.eq.s32.totalorder %s32, 0
      %p185 = por %p183, %p184
      %s187 = sadd.s32 %s186, 1
      %p190 = scmp.eq.s32.totalorder %s26, 3
      %p191 = scmp.ne.s32.totalorder %s186, %s188
      %p192 = scmp.eq.s32.totalorder %s26, 0
      %p193 = por %p191, %p192
      %p194 = scmp.ne.s32.totalorder %s186, %s188
      %p195 = scmp.eq.s32.totalorder %s31, 3
      %p196 = por %p194, %p195
      %p197 = scmp.ne.s32.totalorder %s188, %s189
      %p198 = scmp.eq.s32.totalorder %s31, 0
      %p199 = por %p197, %p198
      %p200 = scmp.ne.s32.totalorder %s188, %s189
      %p201 = scmp.eq.s32.totalorder %s32, 3
      %p202 = por %p200, %p201
      %p204 = scmp.ne.s32.totalorder %s189, %s203
      %p205 = scmp.eq.s32.totalorder %s32, 0
      %p206 = por %p204, %p205
      %s208 = sadd.s32 %s207, 1
      %p211 = scmp.eq.s32.totalorder %s26, 3
      %p212 = scmp.ne.s32.totalorder %s207, %s209
      %p213 = scmp.eq.s32.totalorder %s26, 0
      %p214 = por %p212, %p213
      %p215 = scmp.ne.s32.totalorder %s207, %s209
      %p216 = scmp.eq.s32.totalorder %s31, 3
      %p217 = por %p215, %p216
      %p218 = scmp.ne.s32.totalorder %s209, %s210
      %p219 = scmp.eq.s32.totalorder %s31, 0
      %p220 = por %p218, %p219
      %p221 = scmp.ne.s32.totalorder %s209, %s210
      %p222 = scmp.eq.s32.totalorder %s32, 3
      %p223 = por %p221, %p222
      %p225 = scmp.ne.s32.totalorder %s210, %s224
      %p226 = scmp.eq.s32.totalorder %s32, 0
      %p227 = por %p225, %p226
      %s229 = sadd.s32 %s228, 1
      %p232 = scmp.eq.s32.totalorder %s26, 3
      %p233 = scmp.ne.s32.totalorder %s228, %s230
      %p234 = scmp.eq.s32.totalorder %s26, 0
      %p235 = por %p233, %p234
      %p236 = scmp.ne.s32.totalorder %s228, %s230
      %p237 = scmp.eq.s32.totalorder %s31, 3
      %p238 = por %p236, %p237
      %p239 = scmp.ne.s32.totalorder %s230, %s231
      %p240 = scmp.eq.s32.totalorder %s31, 0
      %p241 = por %p239, %p240
      %p242 = scmp.ne.s32.totalorder %s230, %s231
      %p243 = scmp.eq.s32.totalorder %s32, 3
      %p244 = por %p242, %p243
      %p246 = scmp.ne.s32.totalorder %s231, %s245
      %p247 = scmp.eq.s32.totalorder %s32, 0
      %p248 = por %p246, %p247
      %s250 = sadd.s32 %s249, 1
      %p253 = scmp.eq.s32.totalorder %s26, 3
      %p254 = scmp.ne.s32.totalorder %s249, %s251
      %p255 = scmp.eq.s32.totalorder %s26, 0
      %p256 = por %p254, %p255
      %p257 = scmp.ne.s32.totalorder %s249, %s251
      %p258 = scmp.eq.s32.totalorder %s31, 3
      %p259 = por %p257, %p258
      %p260 = scmp.ne.s32.totalorder %s251, %s252
      %p261 = scmp.eq.s32.totalorder %s31, 0
      %p262 = por %p260, %p261
      %p263 = scmp.ne.s32.totalorder %s251, %s252
      %p264 = scmp.eq.s32.totalorder %s32, 3
      %p265 = por %p263, %p264
      %p267 = scmp.ne.s32.totalorder %s252, %s266
      %p268 = scmp.eq.s32.totalorder %s32, 0
      %p269 = por %p267, %p268
      %s270 = ssub.s32 %s26, %s33
      %p271 = scmp.eq.s32.totalorder %s270, 0
      %s273 = sadd.s32 %s272, 1
      %s274 = scalar_select %p271, %s272, %s273
      %p277 = pneg %p271
      %p278 = scmp.eq.s32.totalorder %s26, 3
      %p279 = por %p277, %p278
      %p280 = scmp.ne.s32.totalorder %s272, %s275
      %p281 = scmp.eq.s32.totalorder %s26, 0
      %p282 = por %p280, %p281
      %p283 = scmp.ne.s32.totalorder %s272, %s275
      %p284 = scmp.eq.s32.totalorder %s31, 3
      %p285 = por %p283, %p284
      %p286 = scmp.ne.s32.totalorder %s275, %s276
      %p287 = scmp.eq.s32.totalorder %s31, 0
      %p288 = por %p286, %p287
      %p289 = scmp.ne.s32.totalorder %s275, %s276
      %p290 = scmp.eq.s32.totalorder %s32, 3
      %p291 = por %p289, %p290
      %p293 = scmp.ne.s32.totalorder %s276, %s292
      %p294 = scmp.eq.s32.totalorder %s32, 0
      %p295 = por %p293, %p294
      %p296 = scmp.le.s32.totalorder 1, %s26
      %p297 = scmp.lt.s32.totalorder %s26, 5
      %p298 = pnand %p296, %p297
      %p299 = pneg %p298
      // Predicated region
      $region9: #{tpu_custom_call.1} parent=5 // pred_check
        _
      $region10: #{tpu_custom_call.1} parent=5 // pred_check_branch
        %301 = sbr.rel (%p298) target = $region12
      $region11: #{tpu_custom_call.1} parent=5 // pred_region
        %s302 = ssub.s32 %s26, 1
        // Predicated region
        $region13: #{tpu_custom_call.1} parent=11 // pred_check
          %p303 = pneg %p73
        $region14: #{tpu_custom_call.1} parent=11 // pred_check_branch
          %305 = sbr.rel (%p303) target = $region16
        $region15: #{tpu_custom_call.1} parent=11 // pred_region
          %s307 = ssub.s32 16, 16
          %308 = vsyncadd [#allocation6], %s307
          %s310 = sshll.u32 [#allocation5], 4
          %s311 = int_to_ptr.vmem [resolvable:$true] %s310
          %313 = dma.hbm_to_vmem [thread:$0]  %s1, 16, %s311, [#allocation6]
        $region16: #{tpu_custom_call.1} parent=11 // pred_fallthru
          _
        // Predicated region
        $region17: #{tpu_custom_call.1} parent=11 // pred_check
          %p314 = pneg %p94
        $region18: #{tpu_custom_call.1} parent=11 // pred_check_branch
          %316 = sbr.rel (%p314) target = $region20
        $region19: #{tpu_custom_call.1} parent=11 // pred_region
          %s318 = ssub.s32 16, 16
          %319 = vsyncadd [#allocation6], %s318
          %s321 = sshll.u32 [#allocation7], 4
          %s322 = int_to_ptr.vmem [resolvable:$true] %s321
          %324 = dma.hbm_to_vmem [thread:$0]  %s2, 16, %s322, [#allocation6]
        $region20: #{tpu_custom_call.1} parent=11 // pred_fallthru
          _
        // Predicated region
        $region21: #{tpu_custom_call.1} parent=11 // pred_check
          %p325 = pneg %p115
        $region22: #{tpu_custom_call.1} parent=11 // pred_check_branch
          %327 = sbr.rel (%p325) target = $region24
        $region23: #{tpu_custom_call.1} parent=11 // pred_region
          _
        $region24: #{tpu_custom_call.1} parent=11 // pred_fallthru
          _
        // Predicated region
        $region25: #{tpu_custom_call.1} parent=11 // pred_check
          %p328 = pneg %p136
        $region26: #{tpu_custom_call.1} parent=11 // pred_check_branch
          %330 = sbr.rel (%p328) target = $region28
        $region27: #{tpu_custom_call.1} parent=11 // pred_region
          %s332 = ssub.s32 16, 16
          %333 = vsyncadd [#allocation9], %s332
          %s335 = sshll.u32 [#allocation8], 4
          %s336 = int_to_ptr.vmem [resolvable:$true] %s335
          %338 = dma.hbm_to_vmem [thread:$0]  %s4, 16, %s336, [#allocation9]
        $region28: #{tpu_custom_call.1} parent=11 // pred_fallthru
          _
        // Predicated region
        $region29: #{tpu_custom_call.1} parent=11 // pred_check
          %p339 = pneg %p157
        $region30: #{tpu_custom_call.1} parent=11 // pred_check_branch
          %341 = sbr.rel (%p339) target = $region32
        $region31: #{tpu_custom_call.1} parent=11 // pred_region
          _
        $region32: #{tpu_custom_call.1} parent=11 // pred_fallthru
          _
        // Predicated region
        $region33: #{tpu_custom_call.1} parent=11 // pred_check
          %p342 = pneg %p178
        $region34: #{tpu_custom_call.1} parent=11 // pred_check_branch
          %344 = sbr.rel (%p342) target = $region36
        $region35: #{tpu_custom_call.1} parent=11 // pred_region
          _
        $region36: #{tpu_custom_call.1} parent=11 // pred_fallthru
          _
        // Predicated region
        $region37: #{tpu_custom_call.1} parent=11 // pred_check
          %p345 = pneg %p199
        $region38: #{tpu_custom_call.1} parent=11 // pred_check_branch
          %347 = sbr.rel (%p345) target = $region40
        $region39: #{tpu_custom_call.1} parent=11 // pred_region
          %s349 = ssub.s32 4096, 4096
          %350 = vsyncadd [#allocation9], %s349
          %s351 = sshll.u32 [#allocation10], 4
          %s352 = int_to_ptr.vmem [resolvable:$true] %s351
          %357 = dma.hbm_to_vmem [thread:$0]  %s7, 4096, %s352, [#allocation9], 256, 256, 16
        $region40: #{tpu_custom_call.1} parent=11 // pred_fallthru
          _
        // Predicated region
        $region41: #{tpu_custom_call.1} parent=11 // pred_check
          %p358 = pneg %p220
        $region42: #{tpu_custom_call.1} parent=11 // pred_check_branch
          %360 = sbr.rel (%p358) target = $region44
        $region43: #{tpu_custom_call.1} parent=11 // pred_region
          _
        $region44: #{tpu_custom_call.1} parent=11 // pred_fallthru
          _
        // Predicated region
        $region45: #{tpu_custom_call.1} parent=11 // pred_check
          %p361 = pneg %p241
        $region46: #{tpu_custom_call.1} parent=11 // pred_check_branch
          %363 = sbr.rel (%p361) target = $region48
        $region47: #{tpu_custom_call.1} parent=11 // pred_region
          %s365 = ssub.s32 4096, 4096
          %366 = vsyncadd [#allocation12], %s365
          %s367 = sshll.u32 [#allocation11], 4
          %s368 = int_to_ptr.vmem [resolvable:$true] %s367
          %373 = dma.hbm_to_vmem [thread:$0]  %s9, 4096, %s368, [#allocation12], 128, 128, 8
        $region48: #{tpu_custom_call.1} parent=11 // pred_fallthru
          _
        // Predicated region
        $region49: #{tpu_custom_call.1} parent=11 // pred_check
          %p374 = pneg %p262
        $region50: #{tpu_custom_call.1} parent=11 // pred_check_branch
          %376 = sbr.rel (%p374) target = $region52
        $region51: #{tpu_custom_call.1} parent=11 // pred_region
          _
        $region52: #{tpu_custom_call.1} parent=11 // pred_fallthru
          _
      $region12: #{tpu_custom_call.1} parent=5 // pred_fallthru
        _
      %p377 = scmp.lt.s32.totalorder %s26, 4
      // Predicated region
      $region53: #{tpu_custom_call.1} parent=5 // pred_check
        %p378 = pneg %p377
      $region54: #{tpu_custom_call.1} parent=5 // pred_check_branch
        %380 = sbr.rel (%p378) target = $region56
      $region55: #{tpu_custom_call.1} parent=5 // pred_region
        // Predicated region
        $region57: #{tpu_custom_call.1} parent=55 // pred_check
          %p381 = pneg %p46
        $region58: #{tpu_custom_call.1} parent=55 // pred_check_branch
          %383 = sbr.rel (%p381) target = $region60
        $region59: #{tpu_custom_call.1} parent=55 // pred_region
          %s384 = sand.u32 %s36, 1
          %s385 = scalar_lea.sflag [#allocation3], %s384
          %s386 = sand.u32 %s36, 1
          %s387 = smul.addr %s386, 8
          %s388 = scalar_lea.vmem [#allocation2], %s387
          %s390 = ssub.s32 128, 128
          %391 = vsyncadd %s385, %s390
          %s392 = smul.addr %s26, 128
          %s393 = scalar_lea.hbm %s0, %s392
          %s395 = sshll.u32 %s388, 4
          %s396 = int_to_ptr.vmem [resolvable:$true] %s395
          %398 = dma.hbm_to_vmem [thread:$0]  %s393, 128, %s396, %s385
        $region60: #{tpu_custom_call.1} parent=55 // pred_fallthru
          _
      $region56: #{tpu_custom_call.1} parent=5 // pred_fallthru
        _
      %p399 = scmp.le.s32.totalorder 1, %s26
      %p400 = scmp.lt.s32.totalorder %s26, 5
      %p401 = pnand %p399, %p400
      %p402 = pneg %p401
      // Predicated region
      $region61: #{tpu_custom_call.1} parent=5 // pred_check
        _
      $region62: #{tpu_custom_call.1} parent=5 // pred_check_branch
        %404 = sbr.rel (%p401) target = $region64
      $region63: #{tpu_custom_call.1} parent=5 // pred_region
        %s405 = ssub.s32 %s26, 1
        %s406 = sand.u32 %s39, 1
        %s407 = scalar_lea.sflag [#allocation3], %s406
        %s408 = sand.u32 %s39, 1
        %s409 = smul.addr %s408, 8
        %s410 = scalar_lea.vmem [#allocation2], %s409
        // Predicated region
        $region65: #{tpu_custom_call.1} parent=63 // pred_check
          %p411 = pneg %p52
        $region66: #{tpu_custom_call.1} parent=63 // pred_check_branch
          %413 = sbr.rel (%p411) target = $region68
        $region67: #{tpu_custom_call.1} parent=63 // pred_region
          %414 = dma.done %s407, 128
        $region68: #{tpu_custom_call.1} parent=63 // pred_fallthru
          _
        // Predicated region
        $region69: #{tpu_custom_call.1} parent=63 // pred_check
          %p415 = pneg %p73
        $region70: #{tpu_custom_call.1} parent=63 // pred_check_branch
          %417 = sbr.rel (%p415) target = $region72
        $region71: #{tpu_custom_call.1} parent=63 // pred_region
          %418 = dma.done [#allocation6], 16
        $region72: #{tpu_custom_call.1} parent=63 // pred_fallthru
          _
        // Predicated region
        $region73: #{tpu_custom_call.1} parent=63 // pred_check
          %p419 = pneg %p94
        $region74: #{tpu_custom_call.1} parent=63 // pred_check_branch
          %421 = sbr.rel (%p419) target = $region76
        $region75: #{tpu_custom_call.1} parent=63 // pred_region
          %422 = dma.done [#allocation6], 16
        $region76: #{tpu_custom_call.1} parent=63 // pred_fallthru
          _
        // Predicated region
        $region77: #{tpu_custom_call.1} parent=63 // pred_check
          %p423 = pneg %p136
        $region78: #{tpu_custom_call.1} parent=63 // pred_check_branch
          %425 = sbr.rel (%p423) target = $region80
        $region79: #{tpu_custom_call.1} parent=63 // pred_region
          %426 = dma.done [#allocation9], 16
        $region80: #{tpu_custom_call.1} parent=63 // pred_fallthru
          _
        // Predicated region
        $region81: #{tpu_custom_call.1} parent=63 // pred_check
          %p427 = pneg %p199
        $region82: #{tpu_custom_call.1} parent=63 // pred_check_branch
          %429 = sbr.rel (%p427) target = $region84
        $region83: #{tpu_custom_call.1} parent=63 // pred_region
          %430 = dma.done [#allocation9], 4096
        $region84: #{tpu_custom_call.1} parent=63 // pred_fallthru
          _
        // Predicated region
        $region85: #{tpu_custom_call.1} parent=63 // pred_check
          %p431 = pneg %p241
        $region86: #{tpu_custom_call.1} parent=63 // pred_check_branch
          %433 = sbr.rel (%p431) target = $region88
        $region87: #{tpu_custom_call.1} parent=63 // pred_region
          %434 = dma.done [#allocation12], 4096
        $region88: #{tpu_custom_call.1} parent=63 // pred_fallthru
          _
        %s435 = sand.u32 %s39, 1
        %s436 = scalar_lea.sflag [#allocation3], %s435
        %s437 = sand.u32 %s39, 1
        %s438 = smul.addr %s437, 8
        %s439 = scalar_lea.vmem [#allocation2], %s438
        %p440 = pneg %p52
        %p441 = pneg %p49
        %p442 = pneg %p73
        %p443 = pneg %p70
        %p444 = pneg %p94
        %p445 = pneg %p91
        %p446 = pneg %p115
        %p447 = pneg %p112
        %p448 = pneg %p136
        %p449 = pneg %p133
        %p450 = pneg %p157
        %p451 = pneg %p154
        %p452 = pneg %p178
        %p453 = pneg %p175
        %p454 = pneg %p199
        %p455 = pneg %p196
        %p456 = pneg %p220
        %p457 = pneg %p217
        %p458 = pneg %p241
        %p459 = pneg %p238
        %p460 = pneg %p262
        %p461 = pneg %p259
        %p462 = pneg %p288
        %p463 = pneg %p285
        %s464 = sand.u32 %s275, 1
        %s465 = scalar_lea.sflag [#allocation4], %s464
        %s466 = sand.u32 %s275, 1
        %s467 = smul.addr %s466, 8
        %s468 = scalar_lea.vmem [#allocation13], %s467
        %v469 = vld [vmem:[#allocation5] sm:$0x1]
        %v470 = vld [vmem:[#allocation7] sm:$0x1]
        %v471 = vld [vmem:[#allocation8] sm:$0x1]
        %v472 = vld [vmem:[%s6] sm:$0xff]
        %v473 = vld [vmem:[%s8] sm:$0x3]
        %v474 = vld [vmem:[%s10] sm:$0x1]
        %v475 = vld [vmem:[%s410] sm:$0xff]
        %476 = vadd.xlane.f32.xlu0 %v475
        %v477 = vpop.xlane.xlu0 %476
        %v478 = vrcp.pop 128.0
        %v479 = vmul.f32 %v477, %v478
        %v480 = vsub.f32 %v475, %v479
        %v481 = vmul.f32 %v480, %v480
        %482 = vadd.xlane.f32.xlu0 %v481
        %v483 = vpop.xlane.xlu0 %482
        %v484 = vmul.f32 %v483, %v478
        %v485 = vadd.f32 %v484, 1e-05
        %v486 = vrsqrt.pop %v485
        %v487 = vmul.f32 %v480, %v486
        %v489 = vlaneseq
        %v490 = vshrl.u32 %v489, 7
        %v491 = vsub.s32 0, %v490
        %v492 = vrot.slane %v469, %v491
        %v494 = vmul.f32 %v487, %v492
        %v496 = vlaneseq
        %v497 = vshrl.u32 %v496, 7
        %v498 = vsub.s32 0, %v497
        %v499 = vrot.slane %v470, %v498
        %v501 = vadd.f32 %v494, %v499
        %v502 = vld [vmem:[%s3] sm:$0xff]
        %v504 = vlaneseq
        %v505 = vshrl.u32 %v504, 7
        %v506 = vsub.s32 0, %v505
        %v507 = vrot.slane %v471, %v506
        %509 = vxpose.xlu0.b32.start [1/16] %v501, 128
        %510 = vxpose.xlu0.b32.cont [2/16] 0.0, 128
        %511 = vxpose.xlu0.b32.cont [3/16] 0.0, 128
        %512 = vxpose.xlu0.b32.cont [4/16] 0.0, 128
        %513 = vxpose.xlu0.b32.cont [5/16] 0.0, 128
        %514 = vxpose.xlu0.b32.cont [6/16] 0.0, 128
        %515 = vxpose.xlu0.b32.cont [7/16] 0.0, 128
        %516 = vxpose.xlu0.b32.cont [8/16] 0.0, 128
        %517 = vxpose.xlu0.b32.cont [9/16] 0.0, 128
        %518 = vxpose.xlu0.b32.cont [10/16] 0.0, 128
        %519 = vxpose.xlu0.b32.cont [11/16] 0.0, 128
        %520 = vxpose.xlu0.b32.cont [12/16] 0.0, 128
        %521 = vxpose.xlu0.b32.cont [13/16] 0.0, 128
        %522 = vxpose.xlu0.b32.cont [14/16] 0.0, 128
        %523 = vxpose.xlu0.b32.cont [15/16] 0.0, 128
        %524 = vxpose.xlu0.b32.end [16/16] 0.0, 128
        %v525 = vpop.trf.xlu0
        %v526 = vpop.trf.xlu0
        %v527 = vpop.trf.xlu0
        %v528 = vpop.trf.xlu0
        %v529 = vpop.trf.xlu0
        %v530 = vpop.trf.xlu0
        %v531 = vpop.trf.xlu0
        %v532 = vpop.trf.xlu0
        %v533 = vpop.trf.xlu0
        %v534 = vpop.trf.xlu0
        %v535 = vpop.trf.xlu0
        %v536 = vpop.trf.xlu0
        %v537 = vpop.trf.xlu0
        %v538 = vpop.trf.xlu0
        %v539 = vpop.trf.xlu0
        %v540 = vpop.trf.xlu0
        %vm541 = vcmask 64512
        %v543 = vsel %vm541, %v525, 0
        %v546 = vsel %vm541, %v526, 0
        %v549 = vsel %vm541, %v527, 0
        %v552 = vsel %vm541, %v528, 0
        %v555 = vsel %vm541, %v529, 0
        %v558 = vsel %vm541, %v530, 0
        %v561 = vsel %vm541, %v531, 0
        %v564 = vsel %vm541, %v532, 0
        %v567 = vsel %vm541, %v533, 0
        %v570 = vsel %vm541, %v534, 0
        %v573 = vsel %vm541, %v535, 0
        %v576 = vsel %vm541, %v536, 0
        %v579 = vsel %vm541, %v537, 0
        %v582 = vsel %vm541, %v538, 0
        %v585 = vsel %vm541, %v539, 0
        %v588 = vsel %vm541, %v540, 0
        %590 = vmatprep.subr.mxu0 0.0
        %591 = vmatpush1.msra.mxu0 0.0
        %592 = vmatprep.subr.mxu0 0.0
        %593 = vmatpush1.msra.mxu0 0.0
        %594 = vmatprep.subr.mxu0 0.0
        %595 = vmatpush1.msra.mxu0 0.0
        %596 = vmatprep.subr.mxu0 0.0
        %597 = vmatpush1.msra.mxu0 0.0
        %598 = vmatprep.subr.mxu0 0.0
        %599 = vmatpush1.msra.mxu0 0.0
        %600 = vmatprep.subr.mxu0 0.0
        %601 = vmatpush1.msra.mxu0 0.0
        %602 = vmatprep.subr.mxu0 0.0
        %603 = vmatpush1.msra.mxu0 0.0
        %604 = vmatprep.subr.mxu0 0.0
        %605 = vmatpush1.msra.mxu0 0.0
        %606 = vmatprep.subr.mxu0 0.0
        %607 = vmatpush1.msra.mxu0 0.0
        %608 = vmatprep.subr.mxu0 0.0
        %609 = vmatpush1.msra.mxu0 0.0
        %610 = vmatprep.subr.mxu0 0.0
        %611 = vmatpush1.msra.mxu0 0.0
        %612 = vmatprep.subr.mxu0 0.0
        %613 = vmatpush1.msra.mxu0 0.0
        %614 = vmatprep.subr.mxu0 0.0
        %615 = vmatpush1.msra.mxu0 0.0
        %616 = vmatprep.subr.mxu0 0.0
        %617 = vmatpush1.msra.mxu0 0.0
        %618 = vmatprep.subr.mxu0 0.0
        %619 = vmatpush1.msra.mxu0 0.0
        %620 = vmatprep.subr.mxu0 0.0
        %621 = vmatpush1.msra.mxu0 %v502
        %622 = vmatprep.subr.mxu0 0.0
        %623 = vmatpush2.msra.mxu0 0.0
        %624 = vmatprep.subr.mxu0 0.0
        %625 = vmatpush2.msra.mxu0 0.0
        %626 = vmatprep.subr.mxu0 0.0
        %627 = vmatpush2.msra.mxu0 0.0
        %628 = vmatprep.subr.mxu0 0.0
        %629 = vmatpush2.msra.mxu0 0.0
        %630 = vmatprep.subr.mxu0 0.0
        %631 = vmatpush2.msra.mxu0 0.0
        %632 = vmatprep.subr.mxu0 0.0
        %633 = vmatpush2.msra.mxu0 0.0
        %634 = vmatprep.subr.mxu0 0.0
        %635 = vmatpush2.msra.mxu0 0.0
        %636 = vmatprep.subr.mxu0 0.0
        %637 = vmatpush2.msra.mxu0 0.0
        %638 = vmatprep.subr.mxu0 0.0
        %639 = vmatpush2.msra.mxu0 0.0
        %640 = vmatprep.subr.mxu0 0.0
        %641 = vmatpush2.msra.mxu0 0.0
        %642 = vmatprep.subr.mxu0 0.0
        %643 = vmatpush2.msra.mxu0 0.0
        %644 = vmatprep.subr.mxu0 0.0
        %645 = vmatpush2.msra.mxu0 0.0
        %646 = vmatprep.subr.mxu0 0.0
        %647 = vmatpush2.msra.mxu0 0.0
        %648 = vmatprep.subr.mxu0 0.0
        %649 = vmatpush2.msra.mxu0 0.0
        %650 = vmatprep.subr.mxu0 0.0
        %651 = vmatpush2.msra.mxu0 0.0
        %652 = vmatprep.subr.mxu0 0.0
        %653 = vmatpush2.msra.mxu0 0.0
        %654 = vmatprep.mubr.f32.mxu0 0.0
        %655 = vmatmul.mubr.f32.gmra.mxu0 %v543
        %v656 = vpop.f32.mrf.mxu0
        %v657 = vadd.f32 %v507, %v656
        %v658 = vpop.f32.mrf.mxu0
        %659 = vmatprep.mubr.f32.mxu0 0.0
        %660 = vmatmul.mubr.f32.gmra.mxu0 %v546
        %v661 = vpop.f32.mrf.mxu0
        %v662 = vadd.f32 %v507, %v661
        %v663 = vpop.f32.mrf.mxu0
        %664 = vmatprep.mubr.f32.mxu0 0.0
        %665 = vmatmul.mubr.f32.gmra.mxu0 %v549
        %v666 = vpop.f32.mrf.mxu0
        %v667 = vadd.f32 %v507, %v666
        %v668 = vpop.f32.mrf.mxu0
        %669 = vmatprep.mubr.f32.mxu0 0.0
        %670 = vmatmul.mubr.f32.gmra.mxu0 %v552
        %v671 = vpop.f32.mrf.mxu0
        %v672 = vadd.f32 %v507, %v671
        %v673 = vpop.f32.mrf.mxu0
        %674 = vmatprep.mubr.f32.mxu0 0.0
        %675 = vmatmul.mubr.f32.gmra.mxu0 %v555
        %v676 = vpop.f32.mrf.mxu0
        %v677 = vadd.f32 %v507, %v676
        %v678 = vpop.f32.mrf.mxu0
        %679 = vmatprep.mubr.f32.mxu0 0.0
        %680 = vmatmul.mubr.f32.gmra.mxu0 %v558
        %v681 = vpop.f32.mrf.mxu0
        %v682 = vadd.f32 %v507, %v681
        %v683 = vpop.f32.mrf.mxu0
        %684 = vmatprep.mubr.f32.mxu0 0.0
        %685 = vmatmul.mubr.f32.gmra.mxu0 %v561
        %v686 = vpop.f32.mrf.mxu0
        %v687 = vadd.f32 %v507, %v686
        %v688 = vpop.f32.mrf.mxu0
        %689 = vmatprep.mubr.f32.mxu0 0.0
        %690 = vmatmul.mubr.f32.gmra.mxu0 %v564
        %v691 = vpop.f32.mrf.mxu0
        %v692 = vadd.f32 %v507, %v691
        %v693 = vpop.f32.mrf.mxu0
        %694 = vmatprep.mubr.f32.mxu0 0.0
        %695 = vmatmul.mubr.f32.gmra.mxu0 %v567
        %v696 = vpop.f32.mrf.mxu0
        %v697 = vadd.f32 %v507, %v696
        %v698 = vpop.f32.mrf.mxu0
        %699 = vmatprep.mubr.f32.mxu0 0.0
        %700 = vmatmul.mubr.f32.gmra.mxu0 %v570
        %v701 = vpop.f32.mrf.mxu0
        %v702 = vadd.f32 %v507, %v701
        %v703 = vpop.f32.mrf.mxu0
        %704 = vmatprep.mubr.f32.mxu0 0.0
        %705 = vmatmul.mubr.f32.gmra.mxu0 %v573
        %v706 = vpop.f32.mrf.mxu0
        %v707 = vadd.f32 %v507, %v706
        %v708 = vpop.f32.mrf.mxu0
        %709 = vmatprep.mubr.f32.mxu0 0.0
        %710 = vmatmul.mubr.f32.gmra.mxu0 %v576
        %v711 = vpop.f32.mrf.mxu0
        %v712 = vadd.f32 %v507, %v711
        %v713 = vpop.f32.mrf.mxu0
        %714 = vmatprep.mubr.f32.mxu0 0.0
        %715 = vmatmul.mubr.f32.gmra.mxu0 %v579
        %v716 = vpop.f32.mrf.mxu0
        %v717 = vadd.f32 %v507, %v716
        %v718 = vpop.f32.mrf.mxu0
        %719 = vmatprep.mubr.f32.mxu0 0.0
        %720 = vmatmul.mubr.f32.gmra.mxu0 %v582
        %v721 = vpop.f32.mrf.mxu0
        %v722 = vadd.f32 %v507, %v721
        %v723 = vpop.f32.mrf.mxu0
        %724 = vmatprep.mubr.f32.mxu0 0.0
        %725 = vmatmul.mubr.f32.gmra.mxu0 %v585
        %v726 = vpop.f32.mrf.mxu0
        %v727 = vadd.f32 %v507, %v726
        %v728 = vpop.f32.mrf.mxu0
        %729 = vmatprep.mubr.f32.mxu0 0.0
        %730 = vmatmul.mubr.f32.gmra.mxu0 %v588
        %v731 = vpop.f32.mrf.mxu0
        %v732 = vadd.f32 %v507, %v731
        %v733 = vpop.f32.mrf.mxu0
        %734 = vdwg.mxu0
        %v735 = vmul.f32 %v657, 0.5
        %v736 = vmul.f32 %v662, 0.5
        %v737 = vmul.f32 %v667, 0.5
        %v738 = vmul.f32 %v672, 0.5
        %v739 = vmul.f32 %v677, 0.5
        %v740 = vmul.f32 %v682, 0.5
        %v741 = vmul.f32 %v687, 0.5
        %v742 = vmul.f32 %v692, 0.5
        %v743 = vmul.f32 %v697, 0.5
        %v744 = vmul.f32 %v702, 0.5
        %v745 = vmul.f32 %v707, 0.5
        %v746 = vmul.f32 %v712, 0.5
        %v747 = vmul.f32 %v717, 0.5
        %v748 = vmul.f32 %v722, 0.5
        %v749 = vmul.f32 %v727, 0.5
        %v750 = vmul.f32 %v732, 0.5
        %v751 = vmul.f32 %v657, 0.70710677
        %v752 = vmul.f32 %v662, 0.70710677
        %v753 = vmul.f32 %v667, 0.70710677
        %v754 = vmul.f32 %v672, 0.70710677
        %v755 = vmul.f32 %v677, 0.70710677
        %v756 = vmul.f32 %v682, 0.70710677
        %v757 = vmul.f32 %v687, 0.70710677
        %v758 = vmul.f32 %v692, 0.70710677
        %v759 = vmul.f32 %v697, 0.70710677
        %v760 = vmul.f32 %v702, 0.70710677
        %v761 = vmul.f32 %v707, 0.70710677
        %v762 = vmul.f32 %v712, 0.70710677
        %v763 = vmul.f32 %v717, 0.70710677
        %v764 = vmul.f32 %v722, 0.70710677
        %v765 = vmul.f32 %v727, 0.70710677
        %v766 = vmul.f32 %v732, 0.70710677
        %v767 = verf.f32.pop %v751
        %v768 = verf.f32.pop %v752
        %v769 = verf.f32.pop %v753
        %v770 = verf.f32.pop %v754
        %v771 = verf.f32.pop %v755
        %v772 = verf.f32.pop %v756
        %v773 = verf.f32.pop %v757
        %v774 = verf.f32.pop %v758
        %v775 = verf.f32.pop %v759
        %v776 = verf.f32.pop %v760
        %v777 = verf.f32.pop %v761
        %v778 = verf.f32.pop %v762
        %v779 = verf.f32.pop %v763
        %v780 = verf.f32.pop %v764
        %v781 = verf.f32.pop %v765
        %v782 = verf.f32.pop %v766
        %v783 = vadd.f32 %v767, 1.0
        %v784 = vadd.f32 %v768, 1.0
        %v785 = vadd.f32 %v769, 1.0
        %v786 = vadd.f32 %v770, 1.0
        %v787 = vadd.f32 %v771, 1.0
        %v788 = vadd.f32 %v772, 1.0
        %v789 = vadd.f32 %v773, 1.0
        %v790 = vadd.f32 %v774, 1.0
        %v791 = vadd.f32 %v775, 1.0
        %v792 = vadd.f32 %v776, 1.0
        %v793 = vadd.f32 %v777, 1.0
        %v794 = vadd.f32 %v778, 1.0
        %v795 = vadd.f32 %v779, 1.0
        %v796 = vadd.f32 %v780, 1.0
        %v797 = vadd.f32 %v781, 1.0
        %v798 = vadd.f32 %v782, 1.0
        %v799 = vmul.f32 %v735, %v783
        %v800 = vmul.f32 %v736, %v784
        %v801 = vmul.f32 %v737, %v785
        %v802 = vmul.f32 %v738, %v786
        %v803 = vmul.f32 %v739, %v787
        %v804 = vmul.f32 %v740, %v788
        %v805 = vmul.f32 %v741, %v789
        %v806 = vmul.f32 %v742, %v790
        %v807 = vmul.f32 %v743, %v791
        %v808 = vmul.f32 %v744, %v792
        %v809 = vmul.f32 %v745, %v793
        %v810 = vmul.f32 %v746, %v794
        %v811 = vmul.f32 %v747, %v795
        %v812 = vmul.f32 %v748, %v796
        %v813 = vmul.f32 %v749, %v797
        %v814 = vmul.f32 %v750, %v798
        %v815 = vld [vmem:[%s5] sm:$0xff]
        %817 = vset.pattern.permute.xlu0 0
        %818 = vperm.xlu0 %817, %v472
        %v819 = vpop.permute.xlu0 %818
        %821 = vmatprep.subr.mxu0 0.0
        %822 = vmatpush1.xpose.msra.mxu0 %v814
        %823 = vmatprep.subr.mxu0 0.0
        %824 = vmatpush1.xpose.msra.mxu0 %v813
        %825 = vmatprep.subr.mxu0 0.0
        %826 = vmatpush1.xpose.msra.mxu0 %v812
        %827 = vmatprep.subr.mxu0 0.0
        %828 = vmatpush1.xpose.msra.mxu0 %v811
        %829 = vmatprep.subr.mxu0 0.0
        %830 = vmatpush1.xpose.msra.mxu0 %v810
        %831 = vmatprep.subr.mxu0 0.0
        %832 = vmatpush1.xpose.msra.mxu0 %v809
        %833 = vmatprep.subr.mxu0 0.0
        %834 = vmatpush1.xpose.msra.mxu0 %v808
        %835 = vmatprep.subr.mxu0 0.0
        %836 = vmatpush1.xpose.msra.mxu0 %v807
        %837 = vmatprep.subr.mxu0 0.0
        %838 = vmatpush1.xpose.msra.mxu0 %v806
        %839 = vmatprep.subr.mxu0 0.0
        %840 = vmatpush1.xpose.msra.mxu0 %v805
        %841 = vmatprep.subr.mxu0 0.0
        %842 = vmatpush1.xpose.msra.mxu0 %v804
        %843 = vmatprep.subr.mxu0 0.0
        %844 = vmatpush1.xpose.msra.mxu0 %v803
        %845 = vmatprep.subr.mxu0 0.0
        %846 = vmatpush1.xpose.msra.mxu0 %v802
        %847 = vmatprep.subr.mxu0 0.0
        %848 = vmatpush1.xpose.msra.mxu0 %v801
        %849 = vmatprep.subr.mxu0 0.0
        %850 = vmatpush1.xpose.msra.mxu0 %v800
        %851 = vmatprep.subr.mxu0 0.0
        %852 = vmatpush1.xpose.msra.mxu0 %v799
        %853 = vmatprep.subr.mxu0 0.0
        %854 = vmatpush2.xpose.msra.mxu0 0.0
        %855 = vmatprep.subr.mxu0 0.0
        %856 = vmatpush2.xpose.msra.mxu0 0.0
        %857 = vmatprep.subr.mxu0 0.0
        %858 = vmatpush2.xpose.msra.mxu0 0.0
        %859 = vmatprep.subr.mxu0 0.0
        %860 = vmatpush2.xpose.msra.mxu0 0.0
        %861 = vmatprep.subr.mxu0 0.0
        %862 = vmatpush2.xpose.msra.mxu0 0.0
        %863 = vmatprep.subr.mxu0 0.0
        %864 = vmatpush2.xpose.msra.mxu0 0.0
        %865 = vmatprep.subr.mxu0 0.0
        %866 = vmatpush2.xpose.msra.mxu0 0.0
        %867 = vmatprep.subr.mxu0 0.0
        %868 = vmatpush2.xpose.msra.mxu0 0.0
        %869 = vmatprep.subr.mxu0 0.0
        %870 = vmatpush2.xpose.msra.mxu0 0.0
        %871 = vmatprep.subr.mxu0 0.0
        %872 = vmatpush2.xpose.msra.mxu0 0.0
        %873 = vmatprep.subr.mxu0 0.0
        %874 = vmatpush2.xpose.msra.mxu0 0.0
        %875 = vmatprep.subr.mxu0 0.0
        %876 = vmatpush2.xpose.msra.mxu0 0.0
        %877 = vmatprep.subr.mxu0 0.0
        %878 = vmatpush2.xpose.msra.mxu0 0.0
        %879 = vmatprep.subr.mxu0 0.0
        %880 = vmatpush2.xpose.msra.mxu0 0.0
        %881 = vmatprep.subr.mxu0 0.0
        %882 = vmatpush2.xpose.msra.mxu0 0.0
        %883 = vmatprep.subr.mxu0 0.0
        %884 = vmatpush2.xpose.msra.mxu0 0.0
        %885 = vmatprep.mubr.f32.mxu0 0.0
        %886 = vmatmul.mubr.f32.gmra.mxu0 %v815
        %v887 = vpop.f32.mrf.mxu0
        %v888 = vadd.f32 %v819, %v887
        %v889 = vpop.f32.mrf.mxu0
        %890 = vdwg.mxu0
        %891 = vadd.xlane.f32.xlu0 %v888
        %v892 = vpop.xlane.xlu0 %891
        %v893 = vmul.f32 %v892, %v478
        %v894 = vsub.f32 %v888, %v893
        %v895 = vmul.f32 %v894, %v894
        %896 = vadd.xlane.f32.xlu0 %v895
        %v897 = vpop.xlane.xlu0 %896
        %v898 = vmul.f32 %v897, %v478
        %v899 = vadd.f32 %v898, 1e-05
        %v900 = vrsqrt.pop %v899
        %v901 = vmul.f32 %v894, %v900
        %v902 = vmul.f32 %v901, %v492
        %v903 = vadd.f32 %v902, %v499
        %v904 = vld [vmem:[#allocation10] sm:$0xff]
        %v905 = vld [vmem:[#allocation10 + $0x8] sm:$0xff]
        %v906 = vld [vmem:[#allocation10 + $0x10] sm:$0xff]
        %v907 = vld [vmem:[#allocation10 + $0x18] sm:$0xff]
        %v908 = vld [vmem:[#allocation10 + $0x20] sm:$0xff]
        %v909 = vld [vmem:[#allocation10 + $0x28] sm:$0xff]
        %v910 = vld [vmem:[#allocation10 + $0x30] sm:$0xff]
        %v911 = vld [vmem:[#allocation10 + $0x38] sm:$0xff]
        %v912 = vld [vmem:[#allocation10 + $0x40] sm:$0xff]
        %v913 = vld [vmem:[#allocation10 + $0x48] sm:$0xff]
        %v914 = vld [vmem:[#allocation10 + $0x50] sm:$0xff]
        %v915 = vld [vmem:[#allocation10 + $0x58] sm:$0xff]
        %v916 = vld [vmem:[#allocation10 + $0x60] sm:$0xff]
        %v917 = vld [vmem:[#allocation10 + $0x68] sm:$0xff]
        %v918 = vld [vmem:[#allocation10 + $0x70] sm:$0xff]
        %v919 = vld [vmem:[#allocation10 + $0x78] sm:$0xff]
        %v920 = vld [vmem:[#allocation10 + $0x80] sm:$0xff]
        %v921 = vld [vmem:[#allocation10 + $0x88] sm:$0xff]
        %v922 = vld [vmem:[#allocation10 + $0x90] sm:$0xff]
        %v923 = vld [vmem:[#allocation10 + $0x98] sm:$0xff]
        %v924 = vld [vmem:[#allocation10 + $0xa0] sm:$0xff]
        %v925 = vld [vmem:[#allocation10 + $0xa8] sm:$0xff]
        %v926 = vld [vmem:[#allocation10 + $0xb0] sm:$0xff]
        %v927 = vld [vmem:[#allocation10 + $0xb8] sm:$0xff]
        %v928 = vld [vmem:[#allocation10 + $0xc0] sm:$0xff]
        %v929 = vld [vmem:[#allocation10 + $0xc8] sm:$0xff]
        %v930 = vld [vmem:[#allocation10 + $0xd0] sm:$0xff]
        %v931 = vld [vmem:[#allocation10 + $0xd8] sm:$0xff]
        %v932 = vld [vmem:[#allocation10 + $0xe0] sm:$0xff]
        %v933 = vld [vmem:[#allocation10 + $0xe8] sm:$0xff]
        %v934 = vld [vmem:[#allocation10 + $0xf0] sm:$0xff]
        %v935 = vld [vmem:[#allocation10 + $0xf8] sm:$0xff]
        %v937 = vlaneseq
        %v938 = vshrl.u32 %v937, 7
        %v939 = vsub.s32 0, %v938
        %v940 = vrot.slane %v473, %v939
        %v941 = vlaneseq
        %v942 = vshrl.u32 %v941, 7
        %v943 = vsub.s32 1, %v942
        %v944 = vrot.slane %v473, %v943
        %947 = vmatprep.subr.mxu0 %v935
        %948 = vmatpush1.msra.mxu0 %v934
        %949 = vmatprep.subr.mxu0 %v933
        %950 = vmatpush1.msra.mxu0 %v932
        %951 = vmatprep.subr.mxu0 %v931
        %952 = vmatpush1.msra.mxu0 %v930
        %953 = vmatprep.subr.mxu0 %v929
        %954 = vmatpush1.msra.mxu0 %v928
        %955 = vmatprep.subr.mxu0 %v927
        %956 = vmatpush1.msra.mxu0 %v926
        %957 = vmatprep.subr.mxu0 %v925
        %958 = vmatpush1.msra.mxu0 %v924
        %959 = vmatprep.subr.mxu0 %v923
        %960 = vmatpush1.msra.mxu0 %v922
        %961 = vmatprep.subr.mxu0 %v921
        %962 = vmatpush1.msra.mxu0 %v920
        %963 = vmatprep.subr.mxu0 %v919
        %964 = vmatpush1.msra.mxu0 %v918
        %965 = vmatprep.subr.mxu0 %v917
        %966 = vmatpush1.msra.mxu0 %v916
        %967 = vmatprep.subr.mxu0 %v915
        %968 = vmatpush1.msra.mxu0 %v914
        %969 = vmatprep.subr.mxu0 %v913
        %970 = vmatpush1.msra.mxu0 %v912
        %971 = vmatprep.subr.mxu0 %v911
        %972 = vmatpush1.msra.mxu0 %v910
        %973 = vmatprep.subr.mxu0 %v909
        %974 = vmatpush1.msra.mxu0 %v908
        %975 = vmatprep.subr.mxu0 %v907
        %976 = vmatpush1.msra.mxu0 %v906
        %977 = vmatprep.subr.mxu0 %v905
        %978 = vmatpush1.msra.mxu0 %v904
        %979 = vmatprep.subr.mxu0 0.0
        %980 = vmatpush2.msra.mxu0 0.0
        %981 = vmatprep.subr.mxu0 0.0
        %982 = vmatpush2.msra.mxu0 0.0
        %983 = vmatprep.subr.mxu0 0.0
        %984 = vmatpush2.msra.mxu0 0.0
        %985 = vmatprep.subr.mxu0 0.0
        %986 = vmatpush2.msra.mxu0 0.0
        %987 = vmatprep.subr.mxu0 0.0
        %988 = vmatpush2.msra.mxu0 0.0
        %989 = vmatprep.subr.mxu0 0.0
        %990 = vmatpush2.msra.mxu0 0.0
        %991 = vmatprep.subr.mxu0 0.0
        %992 = vmatpush2.msra.mxu0 0.0
        %993 = vmatprep.subr.mxu0 0.0
        %994 = vmatpush2.msra.mxu0 0.0
        %995 = vmatprep.subr.mxu0 0.0
        %996 = vmatpush2.msra.mxu0 0.0
        %997 = vmatprep.subr.mxu0 0.0
        %998 = vmatpush2.msra.mxu0 0.0
        %999 = vmatprep.subr.mxu0 0.0
        %1000 = vmatpush2.msra.mxu0 0.0
        %1001 = vmatprep.subr.mxu0 0.0
        %1002 = vmatpush2.msra.mxu0 0.0
        %1003 = vmatprep.subr.mxu0 0.0
        %1004 = vmatpush2.msra.mxu0 0.0
        %1005 = vmatprep.subr.mxu0 0.0
        %1006 = vmatpush2.msra.mxu0 0.0
        %1007 = vmatprep.subr.mxu0 0.0
        %1008 = vmatpush2.msra.mxu0 0.0
        %1009 = vmatprep.subr.mxu0 0.0
        %1010 = vmatpush2.msra.mxu0 0.0
        %1011 = vmatprep.mubr.f32.mxu0 0.0
        %1012 = vmatmul.mubr.f32.gmra.mxu0 %v903
        %v1013 = vpop.f32.mrf.mxu0
        %v1014 = vadd.f32 %v940, %v1013
        %v1015 = vpop.f32.mrf.mxu0
        %v1016 = vadd.f32 %v944, %v1015
        %1017 = vdwg.mxu0
        %v1018 = vmul.f32 %v1014, 0.5
        %v1019 = vmul.f32 %v1016, 0.5
        %v1020 = vmul.f32 %v1014, 0.70710677
        %v1021 = vmul.f32 %v1016, 0.70710677
        %v1022 = verf.f32.pop %v1020
        %v1023 = verf.f32.pop %v1021
        %v1024 = vadd.f32 %v1022, 1.0
        %v1025 = vadd.f32 %v1023, 1.0
        %v1026 = vmul.f32 %v1018, %v1024
        %v1027 = vmul.f32 %v1019, %v1025
        %v1028 = vld [vmem:[#allocation11] sm:$0xff]
        %v1029 = vld [vmem:[#allocation11 + $0x8] sm:$0xff]
        %v1030 = vld [vmem:[#allocation11 + $0x10] sm:$0xff]
        %v1031 = vld [vmem:[#allocation11 + $0x18] sm:$0xff]
        %v1032 = vld [vmem:[#allocation11 + $0x20] sm:$0xff]
        %v1033 = vld [vmem:[#allocation11 + $0x28] sm:$0xff]
        %v1034 = vld [vmem:[#allocation11 + $0x30] sm:$0xff]
        %v1035 = vld [vmem:[#allocation11 + $0x38] sm:$0xff]
        %v1036 = vld [vmem:[#allocation11 + $0x40] sm:$0xff]
        %v1037 = vld [vmem:[#allocation11 + $0x48] sm:$0xff]
        %v1038 = vld [vmem:[#allocation11 + $0x50] sm:$0xff]
        %v1039 = vld [vmem:[#allocation11 + $0x58] sm:$0xff]
        %v1040 = vld [vmem:[#allocation11 + $0x60] sm:$0xff]
        %v1041 = vld [vmem:[#allocation11 + $0x68] sm:$0xff]
        %v1042 = vld [vmem:[#allocation11 + $0x70] sm:$0xff]
        %v1043 = vld [vmem:[#allocation11 + $0x78] sm:$0xff]
        %v1044 = vld [vmem:[#allocation11 + $0x80] sm:$0xff]
        %v1045 = vld [vmem:[#allocation11 + $0x88] sm:$0xff]
        %v1046 = vld [vmem:[#allocation11 + $0x90] sm:$0xff]
        %v1047 = vld [vmem:[#allocation11 + $0x98] sm:$0xff]
        %v1048 = vld [vmem:[#allocation11 + $0xa0] sm:$0xff]
        %v1049 = vld [vmem:[#allocation11 + $0xa8] sm:$0xff]
        %v1050 = vld [vmem:[#allocation11 + $0xb0] sm:$0xff]
        %v1051 = vld [vmem:[#allocation11 + $0xb8] sm:$0xff]
        %v1052 = vld [vmem:[#allocation11 + $0xc0] sm:$0xff]
        %v1053 = vld [vmem:[#allocation11 + $0xc8] sm:$0xff]
        %v1054 = vld [vmem:[#allocation11 + $0xd0] sm:$0xff]
        %v1055 = vld [vmem:[#allocation11 + $0xd8] sm:$0xff]
        %v1056 = vld [vmem:[#allocation11 + $0xe0] sm:$0xff]
        %v1057 = vld [vmem:[#allocation11 + $0xe8] sm:$0xff]
        %v1058 = vld [vmem:[#allocation11 + $0xf0] sm:$0xff]
        %v1059 = vld [vmem:[#allocation11 + $0xf8] sm:$0xff]
        %v1061 = vlaneseq
        %v1062 = vshrl.u32 %v1061, 7
        %v1063 = vsub.s32 0, %v1062
        %v1064 = vrot.slane %v474, %v1063
        %1066 = vmatprep.subr.mxu0 0.0
        %1067 = vmatpush1.msra.mxu0 %v1043
        %1068 = vmatprep.subr.mxu0 0.0
        %1069 = vmatpush1.msra.mxu0 %v1042
        %1070 = vmatprep.subr.mxu0 0.0
        %1071 = vmatpush1.msra.mxu0 %v1041
        %1072 = vmatprep.subr.mxu0 0.0
        %1073 = vmatpush1.msra.mxu0 %v1040
        %1074 = vmatprep.subr.mxu0 0.0
        %1075 = vmatpush1.msra.mxu0 %v1039
        %1076 = vmatprep.subr.mxu0 0.0
        %1077 = vmatpush1.msra.mxu0 %v1038
        %1078 = vmatprep.subr.mxu0 0.0
        %1079 = vmatpush1.msra.mxu0 %v1037
        %1080 = vmatprep.subr.mxu0 0.0
        %1081 = vmatpush1.msra.mxu0 %v1036
        %1082 = vmatprep.subr.mxu0 0.0
        %1083 = vmatpush1.msra.mxu0 %v1035
        %1084 = vmatprep.subr.mxu0 0.0
        %1085 = vmatpush1.msra.mxu0 %v1034
        %1086 = vmatprep.subr.mxu0 0.0
        %1087 = vmatpush1.msra.mxu0 %v1033
        %1088 = vmatprep.subr.mxu0 0.0
        %1089 = vmatpush1.msra.mxu0 %v1032
        %1090 = vmatprep.subr.mxu0 0.0
        %1091 = vmatpush1.msra.mxu0 %v1031
        %1092 = vmatprep.subr.mxu0 0.0
        %1093 = vmatpush1.msra.mxu0 %v1030
        %1094 = vmatprep.subr.mxu0 0.0
        %1095 = vmatpush1.msra.mxu0 %v1029
        %1096 = vmatprep.subr.mxu0 0.0
        %1097 = vmatpush1.msra.mxu0 %v1028
        %1098 = vmatprep.subr.mxu0 0.0
        %1099 = vmatpush2.msra.mxu0 %v1059
        %1100 = vmatprep.subr.mxu0 0.0
        %1101 = vmatpush2.msra.mxu0 %v1058
        %1102 = vmatprep.subr.mxu0 0.0
        %1103 = vmatpush2.msra.mxu0 %v1057
        %1104 = vmatprep.subr.mxu0 0.0
        %1105 = vmatpush2.msra.mxu0 %v1056
        %1106 = vmatprep.subr.mxu0 0.0
        %1107 = vmatpush2.msra.mxu0 %v1055
        %1108 = vmatprep.subr.mxu0 0.0
        %1109 = vmatpush2.msra.mxu0 %v1054
        %1110 = vmatprep.subr.mxu0 0.0
        %1111 = vmatpush2.msra.mxu0 %v1053
        %1112 = vmatprep.subr.mxu0 0.0
        %1113 = vmatpush2.msra.mxu0 %v1052
        %1114 = vmatprep.subr.mxu0 0.0
        %1115 = vmatpush2.msra.mxu0 %v1051
        %1116 = vmatprep.subr.mxu0 0.0
        %1117 = vmatpush2.msra.mxu0 %v1050
        %1118 = vmatprep.subr.mxu0 0.0
        %1119 = vmatpush2.msra.mxu0 %v1049
        %1120 = vmatprep.subr.mxu0 0.0
        %1121 = vmatpush2.msra.mxu0 %v1048
        %1122 = vmatprep.subr.mxu0 0.0
        %1123 = vmatpush2.msra.mxu0 %v1047
        %1124 = vmatprep.subr.mxu0 0.0
        %1125 = vmatpush2.msra.mxu0 %v1046
        %1126 = vmatprep.subr.mxu0 0.0
        %1127 = vmatpush2.msra.mxu0 %v1045
        %1128 = vmatprep.subr.mxu0 0.0
        %1129 = vmatpush2.msra.mxu0 %v1044
        %1130 = vmatprep.mubr.f32.mxu0 %v1027
        %1131 = vmatmul.mubr.f32.gmra.mxu0 %v1026
        %v1132 = vpop.f32.mrf.mxu0
        %v1133 = vadd.f32 %v1064, %v1132
        %v1134 = vpop.f32.mrf.mxu0
        %1135 = vdwg.mxu0
        %v1136 = vadd.f32 %v888, %v1133
        %1137 = vst [vmem:[%s468] sm:$0xff] %v1136
        %s1138 = sand.u32 %s275, 1
        %s1139 = scalar_lea.sflag [#allocation4], %s1138
        %s1140 = sand.u32 %s275, 1
        %s1141 = smul.addr %s1140, 8
        %s1142 = scalar_lea.vmem [#allocation13], %s1141
        // Predicated region
        $region89: #{tpu_custom_call.1} parent=63 // pred_check
          %p1143 = pneg %p285
        $region90: #{tpu_custom_call.1} parent=63 // pred_check_branch
          %1145 = sbr.rel (%p1143) target = $region92
        $region91: #{tpu_custom_call.1} parent=63 // pred_region
          %s1147 = ssub.s32 128, 128
          %1148 = vsyncadd %s1139, %s1147
          %s1149 = smul.addr %s31, 128
          %s1150 = scalar_lea.hbm %s11, %s1149
          %s1152 = sshll.u32 %s1142, 4
          %s1153 = int_to_ptr.vmem [resolvable:$true] %s1152
          %1155 = dma.vmem_to_hbm [thread:$0]  %s1153, 128, %s1150, %s1139
        $region92: #{tpu_custom_call.1} parent=63 // pred_fallthru
          _
      $region64: #{tpu_custom_call.1} parent=5 // pred_fallthru
        _
      %p1156 = scmp.le.s32.totalorder 2, %s26
      // Predicated region
      $region93: #{tpu_custom_call.1} parent=5 // pred_check
        %p1157 = pneg %p1156
      $region94: #{tpu_custom_call.1} parent=5 // pred_check_branch
        %1159 = sbr.rel (%p1157) target = $region96
      $region95: #{tpu_custom_call.1} parent=5 // pred_region
        %s1160 = ssub.s32 %s26, 2
        // Predicated region
        $region97: #{tpu_custom_call.1} parent=95 // pred_check
          %p1161 = pneg %p291
        $region98: #{tpu_custom_call.1} parent=95 // pred_check_branch
          %1163 = sbr.rel (%p1161) target = $region100
        $region99: #{tpu_custom_call.1} parent=95 // pred_region
          %s1164 = sand.u32 %s276, 1
          %s1165 = scalar_lea.sflag [#allocation4], %s1164
          %s1166 = sand.u32 %s276, 1
          %s1167 = smul.addr %s1166, 8
          %s1168 = scalar_lea.vmem [#allocation13], %s1167
          %1169 = dma.done %s1165, 128
        $region100: #{tpu_custom_call.1} parent=95 // pred_fallthru
          _
      $region96: #{tpu_custom_call.1} parent=5 // pred_fallthru
        _
    $region6: #{tpu_custom_call.1} parent=1 // loop_footer
      %s30 = sadd.s32 1, %s26
    $region7: #{tpu_custom_call.1} parent=1 // loop_footer_branch
      %25 = sbr.rel target = $region3
    $region8: #{tpu_custom_call.1} parent=1 // loop_exit
      _
    %1170 = vsyncpa [#allocation3], 1
    %s1171 = scalar_lea.sflag [#allocation3], 1
    %1172 = vsyncpa %s1171, 1
    %1173 = vsyncpa [#allocation6], 1
    %1174 = vsyncpa [#allocation9], 1
    %1175 = vsyncpa [#allocation12], 1
    %1176 = vsyncpa [#allocation4], 1
    %s1177 = scalar_lea.sflag [#allocation4], 1
    %1178 = vsyncpa %s1177, 1

</llo_original>
